<compile_context>
chip_gen: v5e
topology: v5e:2x2
jax: 0.10.0
libtpu: 0.0.40
codegen_flags: <defaults>
</compile_context>

<pallas_src>
import jax
import jax.numpy as jnp
from jax.experimental import pallas as pl
from jax.experimental.pallas import tpu as pltpu


def _cdiv(a, b):
    return -(-a // b)


def _make_kernel(confidence, off_value, n_total, block_batch):
    confidence = float(confidence)
    off_value = float(off_value)

    def kernel(target_ref, pred_ref, out_ref):
        i = pl.program_id(0)

        pred = pred_ref[...]                               # (tb, C) native dtype
        tgt = target_ref[...]                              # (tb, 1) int32

        # Row max + shift in the input dtype (bf16-native on v6e/v7x).
        m = jnp.max(pred, axis=-1, keepdims=True)          # (tb, 1)
        shifted = pred - m                                  # (tb, C)

        # log-sum-exp: cast to f32 only at the exp / accumulation step.
        sum_exp = jnp.sum(jnp.exp(shifted.astype(jnp.float32)),
                          axis=-1, keepdims=True)           # (tb, 1) f32
        lse = jnp.log(sum_exp)

        # Smoothed one-hot: confidence at target, off_value elsewhere.
        # Compare/select/multiply in the input dtype; accumulate in f32.
        col = jax.lax.broadcasted_iota(jnp.int32, shifted.shape, 1)
        true_dist = jnp.where(col == tgt,
                              jnp.asarray(confidence, pred.dtype),
                              jnp.asarray(off_value, pred.dtype))
        weighted = jnp.sum((true_dist * shifted).astype(jnp.float32),
                           axis=-1, keepdims=True)           # (tb, 1) f32

        # -sum(true_dist*logp) = lse*sum(true_dist) - sum(true_dist*shifted),
        # and sum(true_dist) == 1:
        per_row = lse - weighted                             # (tb, 1) f32

        # Mask rows of the ragged last block (global row >= n_total).  Applied
        # AFTER all lane reductions, so garbage/NaN tail rows are discarded.
        row = (jax.lax.broadcasted_iota(jnp.int32, (block_batch, 1), 0)
               + i * block_batch)
        per_row = jnp.where(row < n_total, per_row, jnp.float32(0.0))

        # Each grid step owns its own output slot -> fully parallel grid.
        out_ref[0, 0] = jnp.sum(per_row)

    return kernel


def _vmem_capacity_bytes():
    try:
        return int(pltpu.get_tpu_info().vmem_capacity_bytes)
    except Exception:
        return 64 * 1024 * 1024      # conservative fallback (v7x per-TC VMEM)


def _per_row_vmem_bytes(c, in_itemsize):
    # pred: double-buffered input tile.
    pred_bytes = 2 * c * in_itemsize
    # (tb, C) temporaries the body materializes: shifted / true_dist / product
    # in the input dtype plus the f32 exp result.
    tmp_bytes = c * (12 if in_itemsize == 4 else 10)
    # target (tb, 1) int32 tile pads its lane axis to 128, double-buffered.
    # TODO(synk): a lane-dense target layout would cut this 128x inflation.
    tgt_bytes = 2 * 128 * 4
    return pred_bytes + tmp_bytes + tgt_bytes


def _pick_tiling(n, c, in_itemsize):
    vmem = _vmem_capacity_bytes()
    budget = min(56 * 1024 * 1024, int(vmem * 0.7))
    per_row = _per_row_vmem_bytes(c, in_itemsize)

    cap = max(16, min(budget // per_row, 16384))
    cap = max(16, (cap // 16) * 16)

    num_tiles = max(1, _cdiv(n, cap))
    # Keep >= 2 grid steps when N allows so v7x megacore shards the axis.
    if num_tiles < 2 and n > 32:
        num_tiles = 2
    tb = max(16, _cdiv(n, num_tiles))
    tb = _cdiv(tb, 16) * 16              # multiple of 16 (bf16 sublane pack)
    num_tiles = _cdiv(n, tb)             # ragged tail handled in-kernel
    return tb, num_tiles


def label_smoothing_cross_entropy(pred, target, *, classes, smoothing=0.0,
                                  block_batch=None):
    """pred: (N, C) float32/bfloat16, target: (N,) int -> scalar f32 loss."""
    n, c = pred.shape
    assert c == classes
    assert classes >= 2 or smoothing == 0.0, "smoothing needs classes >= 2"
    confidence = 1.0 - smoothing
    off_value = smoothing / (classes - 1) if classes > 1 else 0.0

    in_itemsize = jnp.dtype(pred.dtype).itemsize
    if block_batch is None:
        tb, num_tiles = _pick_tiling(n, c, in_itemsize)
    else:
        tb = block_batch
        num_tiles = _cdiv(n, tb)

    # Targets as an (N, 1) int32 column. No padding of pred or target.
    target2d = target.astype(jnp.int32).reshape(n, 1)

    # Scoped-VMEM limit: computed live footprint + headroom, <= ~90% physical.
    footprint = tb * _per_row_vmem_bytes(c, in_itemsize) + (2 << 20)
    vmem_limit = int(min(int(_vmem_capacity_bytes() * 0.9),
                         max(32 * 1024 * 1024, footprint + (8 << 20))))

    kernel = _make_kernel(confidence, off_value, n, tb)

    partials = pl.pallas_call(
        kernel,
        out_shape=jax.ShapeDtypeStruct((num_tiles, 1), jnp.float32),
        grid_spec=pltpu.PrefetchScalarGridSpec(
            num_scalar_prefetch=0,
            grid=(num_tiles,),
            in_specs=[
                pl.BlockSpec((tb, 1), lambda i: (i, 0)),
                pl.BlockSpec((tb, c), lambda i: (i, 0)),
            ],
            out_specs=pl.BlockSpec(
                (1, 1), lambda i: (i, 0), memory_space=pltpu.SMEM),
        ),
        compiler_params=pltpu.CompilerParams(
            dimension_semantics=("parallel",),
            vmem_limit_bytes=vmem_limit),
    )(target2d, pred)

    # Trivial final reduction + mean over the true (unpadded) batch size.
    return jnp.sum(partials) / jnp.float32(n)


def _reference(pred, target, classes, smoothing):
    confidence = 1.0 - smoothing
    logp = jax.nn.log_softmax(pred.astype(jnp.float32), axis=-1)
    true_dist = jnp.full_like(logp, smoothing / (classes - 1))
    true_dist = true_dist.at[jnp.arange(pred.shape[0]), target].set(confidence)
    return jnp.mean(jnp.sum(-true_dist * logp, axis=-1))


if __name__ == "__main__":
    key = jax.random.PRNGKey(0)

    def run_case(n, c, dtype, smoothing, block_batch, tol):
        k1, k2 = jax.random.split(jax.random.fold_in(key, n * 1000 + c))
        pred = jax.random.normal(k1, (n, c), dtype=jnp.float32).astype(dtype)
        target = jax.random.randint(k2, (n,), 0, c, dtype=jnp.int32)
        loss = label_smoothing_cross_entropy(
            pred, target, classes=c, smoothing=smoothing,
            block_batch=block_batch)
        loss = jax.block_until_ready(loss)
        ref = _reference(pred, target, c, smoothing)
        assert jnp.allclose(loss, ref, atol=tol, rtol=tol), \
            (n, c, dtype, block_batch, loss, ref)

    # single tile, auto tiling, f32
    run_case(16, 128, jnp.float32, 0.1, None, 1e-4)
    # multi-tile with ragged last block (no host-side padding), f32
    run_case(100, 128, jnp.float32, 0.1, 16, 1e-4)
    # bf16 input: native-dtype elementwise path, 2 tiles
    run_case(64, 128, jnp.bfloat16, 0.1, 32, 3e-2)

    print("KERNEL_OK")
</pallas_src>

<mosaic_0001>
module attributes {stable_mosaic.version = 11 : i64} {
  func.func @kernel(%arg0: i32, %arg1: memref<16x1xi32, #tpu.memory_space<vmem>>, %arg2: memref<16x128xf32, #tpu.memory_space<vmem>>, %arg3: memref<1x1xf32, #tpu.memory_space<smem>>) attributes {dimension_semantics = [#tpu.dimension_semantics<parallel>], iteration_bounds = array<i64: 1>, scalar_prefetch = 0 : i64, scratch_operands = 0 : i64, tpu.core_type = #tpu.core_type<tc>, window_params = [{transform_indices = @transform_0, window_bounds = array<i64: 16, 1>}, {transform_indices = @transform_1, window_bounds = array<i64: 16, 128>}, {transform_indices = @transform_2, window_bounds = array<i64: 1, 1>}]} {
    %c0 = arith.constant 0 : index
    %c0_0 = arith.constant 0 : index
    %0 = vector.load %arg2[%c0, %c0_0] : memref<16x128xf32, #tpu.memory_space<vmem>>, vector<16x128xf32>
    %c0_1 = arith.constant 0 : index
    %c0_2 = arith.constant 0 : index
    %1 = vector.load %arg1[%c0_1, %c0_2] : memref<16x1xi32, #tpu.memory_space<vmem>>, vector<16x1xi32>
    %cst = arith.constant dense<0xFF800000> : vector<16xf32>
    %2 = vector.multi_reduction <maximumf>, %0, %cst [1] : vector<16x128xf32> to vector<16xf32>
    %3 = vector.shape_cast %2 : vector<16xf32> to vector<16x1xf32>
    %4 = vector.broadcast %3 : vector<16x1xf32> to vector<16x128xf32>
    %5 = arith.subf %0, %4 : vector<16x128xf32>
    %6 = math.exp %5 : vector<16x128xf32>
    %cst_3 = arith.constant dense<0.000000e+00> : vector<16xf32>
    %7 = vector.multi_reduction <add>, %6, %cst_3 [1] : vector<16x128xf32> to vector<16xf32>
    %8 = vector.shape_cast %7 : vector<16xf32> to vector<16x1xf32>
    %9 = math.log %8 : vector<16x1xf32>
    %10 = tpu.iota {dimensions = array<i32: 1>} : vector<16x128xi32>
    %11 = vector.broadcast %1 : vector<16x1xi32> to vector<16x128xi32>
    %12 = arith.cmpi eq, %10, %11 : vector<16x128xi32>
    %cst_4 = arith.constant 0.899999976 : f32
    %cst_5 = arith.constant 7.87401571E-4 : f32
    %13 = vector.broadcast %cst_4 : f32 to vector<16x128xf32>
    %14 = vector.broadcast %cst_5 : f32 to vector<16x128xf32>
    %15 = arith.select %12, %13, %14 : vector<16x128xi1>, vector<16x128xf32>
    %16 = arith.mulf %15, %5 : vector<16x128xf32>
    %cst_6 = arith.constant dense<0.000000e+00> : vector<16xf32>
    %17 = vector.multi_reduction <add>, %16, %cst_6 [1] : vector<16x128xf32> to vector<16xf32>
    %18 = vector.shape_cast %17 : vector<16xf32> to vector<16x1xf32>
    %19 = arith.subf %9, %18 : vector<16x1xf32>
    %20 = tpu.iota {dimensions = array<i32: 0>} : vector<16x1xi32>
    %c16_i32 = arith.constant 16 : i32
    %21 = arith.muli %arg0, %c16_i32 : i32
    %22 = vector.broadcast %21 : i32 to vector<16x1xi32>
    %23 = arith.addi %20, %22 : vector<16x1xi32>
    %c16_i32_7 = arith.constant 16 : i32
    %24 = vector.broadcast %c16_i32_7 : i32 to vector<16x1xi32>
    %25 = arith.cmpi slt, %23, %24 : vector<16x1xi32>
    %cst_8 = arith.constant 0.000000e+00 : f32
    %26 = vector.broadcast %cst_8 : f32 to vector<16x1xf32>
    %27 = arith.select %25, %19, %26 : vector<16x1xi1>, vector<16x1xf32>
    %28 = vector.shape_cast %27 : vector<16x1xf32> to vector<1x16x1xf32>
    %cst_9 = arith.constant dense<0.000000e+00> : vector<1xf32>
    %29 = vector.multi_reduction <add>, %28, %cst_9 [1, 2] : vector<1x16x1xf32> to vector<1xf32>
    %30 = vector.shape_cast %29 : vector<1xf32> to vector<1x1x1xf32>
    %31 = vector.extract %30[0, 0, 0] : f32 from vector<1x1x1xf32>
    %c0_10 = arith.constant 0 : index
    %c0_11 = arith.constant 0 : index
    %32 = memref.load %arg3[%c0_10, %c0_11] : memref<1x1xf32, #tpu.memory_space<smem>>
    memref.store %31, %arg3[%c0_10, %c0_11] : memref<1x1xf32, #tpu.memory_space<smem>>
    return
  }
  func.func @transform_0(%arg0: i32) -> (i32, i32) {
    %c0_i32 = arith.constant 0 : i32
    %c0_i32_0 = arith.constant 0 : i32
    return %arg0, %c0_i32 : i32, i32
  }
  func.func @transform_1(%arg0: i32) -> (i32, i32) {
    %c0_i32 = arith.constant 0 : i32
    %c0_i32_0 = arith.constant 0 : i32
    return %arg0, %c0_i32 : i32, i32
  }
  func.func @transform_2(%arg0: i32) -> (i32, i32) {
    %c0_i32 = arith.constant 0 : i32
    %c0_i32_0 = arith.constant 0 : i32
    return %arg0, %c0_i32 : i32, i32
  }
}

</mosaic_0001>

<llo_original>
// kernel: tpu_custom_call.1
$region0: #{tpu_custom_call.1}
  #allocation0 [shape = 'u32[]', space=smem, size = 0x4, offset = 0x4, fixed_abs, tag = 'smem constant byte address 0x4 - core index']
  #allocation1 [shape = 'u32[72,128]{1,0:T(1,128)}', space=vmem, size = 0x9000, scoped, tag = 'internal scratch']
  %s0 = inlined_call_operand.vmem [shape: s32[16,1], index: 0, kind: input, shape index: {}]
  %s1 = inlined_call_operand.vmem [shape: f32[16,128], index: 1, kind: input, shape index: {}]
  %s2 = inlined_call_operand.hbm [shape: f32[1,1], index: 2, kind: output, shape index: {}]
  %s3 = sld [smem:[#allocation0]]
  $region18: #{tpu_custom_call.1} parent=0
    _
  %s5 = ssub.s32 1, %s3
  %s6 = scalar_select 0, %s5, %s3
  $region1: #{tpu_custom_call.1} parent=0
    #allocation2 [shape = 'u8[512]{0}', space=smem, size = 0x200, scoped, tag = 'output window, operand 0, single buffered']
    #allocation3 [shape = 's32[1]{0}', space=sflag, size = 0x4, scoped, tag = 'scoped memory for tpu_custom_call.1']
    %7 = vsyncpa [#allocation3], 0
    // Predicated region
    $region2: #{tpu_custom_call.1} parent=1 // pred_check
      _
    $region3: #{tpu_custom_call.1} parent=1 // pred_check_branch
      %9 = sbr.rel (0) target = $region5
    $region4: #{tpu_custom_call.1} parent=1 // pred_region
      _
    $region5: #{tpu_custom_call.1} parent=1 // pred_fallthru
      _
    // Predicated region
    $region6: #{tpu_custom_call.1} parent=1 // pred_check
      _
    $region7: #{tpu_custom_call.1} parent=1 // pred_check_branch
      %11 = sbr.rel (0) target = $region9
    $region8: #{tpu_custom_call.1} parent=1 // pred_region
      _
    $region9: #{tpu_custom_call.1} parent=1 // pred_fallthru
      _
    %v12 = vld [vmem:[%s1] sm:$0xff]
    %v13 = vld [vmem:[%s1 + $0x8] sm:$0xff]
    %v14 = vld [vmem:[%s0] sm:$0xff]
    %v15 = vld [vmem:[%s0 + $0x8] sm:$0xff]
    %16 = vmax.xlane.f32.xlu0 %v12
    %v17 = vpop.xlane.xlu0 %16
    %18 = vmax.xlane.f32.xlu0 %v13
    %v19 = vpop.xlane.xlu0 %18
    %v20 = vsub.f32 %v12, %v17
    %v21 = vsub.f32 %v13, %v19
    %v22 = vmul.f32 %v20, 1.442695
    %v23 = vpow.pop %v22
    %v24 = vmul.f32 %v21, 1.442695
    %v25 = vpow.pop %v24
    %26 = vadd.xlane.f32.xlu0 %v23
    %v27 = vpop.xlane.xlu0 %26
    %28 = vadd.xlane.f32.xlu0 %v25
    %v29 = vpop.xlane.xlu0 %28
    %v30 = vlog2.pop %v27
    %v31 = vmul.f32 %v30, 0.6931472
    %v32 = vlog2.pop %v29
    %v33 = vmul.f32 %v32, 0.6931472
    %v34 = vlaneseq
    %v35 = vand.u32 %v34, 127
    %36 = vset.pattern.permute.xlu0 0
    %37 = vperm.xlu0 %36, %v14
    %v38 = vpop.permute.xlu0 %37
    %39 = vset.pattern.permute.xlu0 0
    %40 = vperm.xlu0 %39, %v15
    %v41 = vpop.permute.xlu0 %40
    %vm42 = vcmp.eq.s32.totalorder %v35, %v38
    %vm43 = vcmp.eq.s32.totalorder %v35, %v41
    %v44 = vsel %vm42, 0.9, 0.0007874016
    %v45 = vsel %vm43, 0.9, 0.0007874016
    %v46 = vmul.f32 %v44, %v20
    %v47 = vmul.f32 %v45, %v21
    %48 = vadd.xlane.f32.xlu0 %v46
    %v49 = vpop.xlane.xlu0 %48
    %50 = vadd.xlane.f32.xlu0 %v47
    %v51 = vpop.xlane.xlu0 %50
    %v52 = vsub.f32 %v31, %v49
    %v53 = vsub.f32 %v33, %v51
    %v54 = vlaneseq
    %v55 = vshrl.u32 %v54, 7
    %v56 = vadd.s32 %v55, 8
    %s57 = smul.u32 0, 16
    %v58 = vstv %s57
    %v59 = vadd.s32 %v55, %v58
    %v60 = vadd.s32 %v56, %v58
    %vm61 = vcmp.lt.s32.totalorder %v59, 16
    %vm62 = vcmp.lt.s32.totalorder %v60, 16
    %v63 = vsel %vm61, %v52, 0.0
    %v64 = vsel %vm62, %v53, 0.0
    %vm65 = vcmask 7168
    %v66 = vsel %vm65, %v63, 0.0
    %v67 = vsel %vm65, %v64, 0.0
    %v68 = vadd.f32 %v66, %v67
    %69 = vadd.xlane.f32.xlu0 %v68
    %v70 = vpop.xlane.xlu0 %69
    %v71 = vrot.slane %v70, 4
    %v72 = vadd.f32 %v70, %v71
    %v73 = vrot.slane %v72, 2
    %v74 = vadd.f32 %v72, %v73
    %v75 = vrot.slane %v74, 1
    %v76 = vadd.f32 %v74, %v75
    %s77 = vtos %v76
    %s78 = scalar_lea.smem [#allocation2], 0
    %79 = sst [smem:[%s78]] %s77
    // Predicated region
    $region10: #{tpu_custom_call.1} parent=1 // pred_check
      _
    $region11: #{tpu_custom_call.1} parent=1 // pred_check_branch
      %81 = sbr.rel (0) target = $region13
    $region12: #{tpu_custom_call.1} parent=1 // pred_region
      %83 = vsyncadd [#allocation3], 0
      %s85 = sshll.u32 %s2, 4
      %s86 = int_to_ptr.hbm [resolvable:$true] %s85
      %88 = dma.smem_to_hbm [#allocation2], 16, %s86, [#allocation3]
    $region13: #{tpu_custom_call.1} parent=1 // pred_fallthru
      _
    // Predicated region
    $region14: #{tpu_custom_call.1} parent=1 // pred_check
      _
    $region15: #{tpu_custom_call.1} parent=1 // pred_check_branch
      %90 = sbr.rel (0) target = $region17
    $region16: #{tpu_custom_call.1} parent=1 // pred_region
      %92 = dma.done [#allocation3], 16
    $region17: #{tpu_custom_call.1} parent=1 // pred_fallthru
      _
    %93 = sfence
    %94 = vsyncpa [#allocation3], 1

</llo_original>
